<compile_context>
chip_gen: v5e
topology: v5e:2x2
jax: 0.10.0
libtpu: 0.0.40
codegen_flags: <defaults>
</compile_context>

<pallas_src>
import functools

import jax
import jax.numpy as jnp
from jax.experimental import pallas as pl
from jax.experimental.pallas import tpu as pltpu

NEG_INF = -1e30
VALID_THRESH = -1e29


def nms_kernel(nit_ref, xd_ref, out_ref, scores_ref, *, conf_thres, iou_thres):
    # nit_ref    : SMEM (num_blocks,) int32 — greedy-loop bound for this block
    #              (min(max_anchors, #candidates)), computed on the host.
    # xd_ref     : (bt, 6, 8, Np) block — channels [x1,y1,x2,y2,conf,cls] on
    #              axis 1; boxes packed dense over (sublane=8, lane=Np).
    # out_ref    : (bt, mpad, 8) block — row k = k-th kept box
    #              [x1,y1,x2,y2,conf,cls,0,0], or all -1.
    # scores_ref : VMEM scratch (bt, 8, Np) f32 — mutable per-box scores.
    bt = xd_ref.shape[0]
    np_ = xd_ref.shape[3]
    mpad = out_ref.shape[1]

    n_iter = nit_ref[pl.program_id(0)]

    # ---- loop-invariant constants, built once (no per-iteration broadcasts) ----
    flat_iota = (jax.lax.broadcasted_iota(jnp.int32, (bt, 8, np_), 1) * np_
                 + jax.lax.broadcasted_iota(jnp.int32, (bt, 8, np_), 2))
    big_idx = 8 * np_
    row_iota = jax.lax.broadcasted_iota(jnp.int32, (1, mpad, 1), 1)
    chan_iota = jax.lax.broadcasted_iota(jnp.int32, (1, 1, 8), 2)
    ch_onehot = [(chan_iota == c).astype(jnp.float32) for c in range(6)]

    # confidence threshold (strict >, like the reference module)
    conf = xd_ref[:, 4, :, :]                                   # (bt, 8, Np)
    scores_ref[...] = jnp.where(conf > conf_thres, conf, NEG_INF)
    out_ref[...] = jnp.full(out_ref.shape, -1.0, dtype=out_ref.dtype)

    # ---- greedy NMS: pick highest remaining score, record it, suppress ----
    @pl.loop(0, n_iter)
    def _(k):
        scores = scores_ref[...]                                # (bt, 8, Np)

        m = jnp.max(jnp.max(scores, axis=2, keepdims=True),
                    axis=1, keepdims=True)                      # (bt, 1, 1)
        valid = m > VALID_THRESH
        cand = jnp.where(scores >= m, flat_iota, big_idx)
        idx = jnp.min(jnp.min(cand, axis=2, keepdims=True),
                      axis=1, keepdims=True)                    # (bt, 1, 1)
        pick = flat_iota == idx                                 # (bt, 8, Np)

        # Coordinate / class slabs straight off the ref each iteration —
        # nothing large stays live across iterations (scores are in VMEM).
        x1_j = xd_ref[:, 0, :, :]
        y1_j = xd_ref[:, 1, :, :]
        x2_j = xd_ref[:, 2, :, :]
        y2_j = xd_ref[:, 3, :, :]
        cls_j = xd_ref[:, 5, :, :]

        def gather(ch):  # value of the picked box, (bt, 1, 1)
            z = jnp.where(pick, ch, 0.0)
            return jnp.sum(jnp.sum(z, axis=2, keepdims=True), axis=1, keepdims=True)

        x1_i = gather(x1_j)
        y1_i = gather(y1_j)
        x2_i = gather(x2_j)
        y2_i = gather(y2_j)
        cls_i = gather(cls_j)
        conf_i = m  # picked box is un-suppressed, so its score == its conf

        area_i = (x2_i - x1_i) * (y2_i - y1_i)                  # (bt, 1, 1)
        area_j = (x2_j - x1_j) * (y2_j - y1_j)                  # (bt, 8, Np)
        iw = jnp.maximum(jnp.minimum(x2_i, x2_j) - jnp.maximum(x1_i, x1_j), 0.0)
        ih = jnp.maximum(jnp.minimum(y2_i, y2_j) - jnp.maximum(y1_i, y1_j), 0.0)
        inter = iw * ih
        union = area_i + area_j - inter
        # divide-free IoU >= iou_thres test (also suppresses the pick itself)
        over = inter >= iou_thres * union
        suppress = jnp.logical_and(valid, jnp.logical_or(over, pick))
        scores_ref[...] = jnp.where(suppress, NEG_INF, scores)

        # Assemble the picked row [x1,y1,x2,y2,conf,cls,0,0] on lanes and
        # select it into output row k (tiny block, pure VPU, no dynamic store).
        row = (x1_i * ch_onehot[0] + y1_i * ch_onehot[1] +
               x2_i * ch_onehot[2] + y2_i * ch_onehot[3] +
               conf_i * ch_onehot[4] + cls_i * ch_onehot[5])    # (bt, 1, 8)
        write = jnp.logical_and(row_iota == k, valid)           # (bt, mpad, 1)
        out_ref[...] = jnp.where(write, row, out_ref[...])


def nms_pallas(x, conf_thres=0.25, iou_thres=0.45, max_anchors=50, block_b=None):
    B, N, C = x.shape
    assert C == 6, "expected boxes of [x1, y1, x2, y2, conf, cls]"

    xf = x.astype(jnp.float32)

    # ---- channel-major, sublane-dense layout: (B, N, 6) -> (B, 6, 8, Np) ----
    np_ = max(1, -(-N // 8))          # ceil(N / 8)
    n_tot = 8 * np_
    xt = jnp.transpose(xf, (0, 2, 1))                    # (B, 6, N)
    if n_tot > N:
        pad = jnp.zeros((B, 6, n_tot - N), jnp.float32)
        pad = pad.at[:, 4, :].set(NEG_INF)               # pad boxes never pass conf_thres
        xt = jnp.concatenate([xt, pad], axis=-1)
    xd = xt.reshape(B, 6, 8, np_)

    mpad = ((int(max_anchors) + 7) // 8) * 8             # sublane-aligned slot count

    # ---- block_b: VMEM budget + keep several grid steps for v7x megacore ----
    if block_b is None:
        # double-buffered input + scores scratch + double-buffered output (bytes/image)
        per_img = (2 * 6 * 8 * np_ + 8 * np_ + 2 * mpad * 8) * 4
        cap_vmem = max(1, (8 * 1024 * 1024) // per_img)   # fits v5e 16 MiB scoped default
        cap_grid = max(1, B // 4)                         # >= 2-4 steps when batched
        block_b = min(B, cap_vmem, cap_grid)
    block_b = max(1, min(int(block_b), B))
    while B % block_b:
        block_b -= 1
    nblocks = B // block_b

    # ---- early-termination bound per block: min(max_anchors, #candidates) ----
    counts = jnp.sum(xf[..., 4] > conf_thres, axis=1).astype(jnp.int32)       # (B,)
    n_iter = jnp.minimum(jnp.max(counts.reshape(nblocks, block_b), axis=1),
                         jnp.int32(max_anchors)).astype(jnp.int32)            # (nblocks,)

    kernel = functools.partial(
        nms_kernel,
        conf_thres=float(conf_thres),
        iou_thres=float(iou_thres),
    )

    raw = pl.pallas_call(
        kernel,
        out_shape=jax.ShapeDtypeStruct((B, mpad, 8), jnp.float32),
        grid_spec=pltpu.PrefetchScalarGridSpec(
            num_scalar_prefetch=1,
            grid=(nblocks,),
            in_specs=[pl.BlockSpec((block_b, 6, 8, np_),
                                   lambda b, nit: (b, 0, 0, 0))],
            out_specs=pl.BlockSpec((block_b, mpad, 8),
                                   lambda b, nit: (b, 0, 0)),
            scratch_shapes=[pltpu.VMEM((block_b, 8, np_), jnp.float32)],
        ),
        compiler_params=pltpu.CompilerParams(
            dimension_semantics=("parallel",)),
    )(n_iter, xd)

    # (B, mpad, 8) -> (B, max_anchors, 6): tiny slice, no transpose needed.
    return raw[:, :max_anchors, :6].astype(x.dtype)


if __name__ == "__main__":
    key = jax.random.PRNGKey(0)
    B, N = 2, 64  # 2 images, 64 candidate boxes each

    k1, k2, k3, k4 = jax.random.split(key, 4)
    xy1 = jax.random.uniform(k1, (B, N, 2)) * 80.0          # top-left corners
    wh = jax.random.uniform(k2, (B, N, 2)) * 40.0 + 1.0     # positive w/h
    xy2 = xy1 + wh                                          # bottom-right
    conf = jax.random.uniform(k3, (B, N, 1))                # [0, 1)
    cls = jnp.floor(jax.random.uniform(k4, (B, N, 1)) * 10.0)
    x = jnp.concatenate([xy1, xy2, conf, cls], axis=-1).astype(jnp.float32)

    conf_thres, iou_thres, max_anchors = 0.25, 0.45, 50
    out = nms_pallas(x, conf_thres=conf_thres, iou_thres=iou_thres,
                     max_anchors=max_anchors)
    out = jax.block_until_ready(out)
    assert out.shape == (B, max_anchors, 6)

    conf_out = out[..., 4]
    valid = conf_out != -1.0
    # kept rows pass the confidence filter; padded rows are all -1
    assert bool(jnp.all(jnp.where(valid, conf_out > conf_thres, True)))
    assert bool(jnp.all(jnp.where(valid[..., None], True, out == -1.0)))
    # kept rows are in descending-confidence order
    both = valid[:, :-1] & valid[:, 1:]
    assert bool(jnp.all(jnp.where(both, conf_out[:, :-1] >= conf_out[:, 1:], True)))
    # no two kept boxes in the same image overlap with IoU >= iou_thres
    x1, y1, x2, y2 = (out[..., i] for i in range(4))
    area = (x2 - x1) * (y2 - y1)
    iw = jnp.maximum(jnp.minimum(x2[:, :, None], x2[:, None, :])
                     - jnp.maximum(x1[:, :, None], x1[:, None, :]), 0.0)
    ih = jnp.maximum(jnp.minimum(y2[:, :, None], y2[:, None, :])
                     - jnp.maximum(y1[:, :, None], y1[:, None, :]), 0.0)
    inter = iw * ih
    union = area[:, :, None] + area[:, None, :] - inter
    pair = (valid[:, :, None] & valid[:, None, :]
            & ~jnp.eye(max_anchors, dtype=bool)[None])
    assert bool(jnp.all(jnp.where(pair, inter < iou_thres * union, True)))

    print("KERNEL_OK")
</pallas_src>

<mosaic_0001>
module attributes {stable_mosaic.version = 11 : i64} {
  func.func @nms_kernel(%arg0: i32, %arg1: memref<2xi32, #tpu.memory_space<smem>>, %arg2: memref<1x6x8x8xf32, #tpu.memory_space<vmem>>, %arg3: memref<1x56x8xf32, #tpu.memory_space<vmem>>, %arg4: memref<1x8x8xf32, #tpu.memory_space<vmem>>) attributes {dimension_semantics = [#tpu.dimension_semantics<parallel>], iteration_bounds = array<i64: 2>, scalar_prefetch = 1 : i64, scratch_operands = 1 : i64, tpu.core_type = #tpu.core_type<tc>, window_params = [{transform_indices = @transform_0, window_bounds = array<i64: 1, 6, 8, 8>}, {transform_indices = @transform_1, window_bounds = array<i64: 1, 56, 8>}]} {
    %0 = arith.index_cast %arg0 : i32 to index
    %1 = memref.load %arg1[%0] : memref<2xi32, #tpu.memory_space<smem>>
    %2 = tpu.iota {dimensions = array<i32: 1>} : vector<1x8x8xi32>
    %c8_i32 = arith.constant 8 : i32
    %3 = vector.broadcast %c8_i32 : i32 to vector<1x8x8xi32>
    %4 = arith.muli %2, %3 : vector<1x8x8xi32>
    %5 = tpu.iota {dimensions = array<i32: 2>} : vector<1x8x8xi32>
    %6 = arith.addi %4, %5 : vector<1x8x8xi32>
    %7 = tpu.iota {dimensions = array<i32: 1>} : vector<1x56x1xi32>
    %8 = tpu.iota {dimensions = array<i32: 2>} : vector<1x1x8xi32>
    %c0_i32 = arith.constant 0 : i32
    %9 = vector.broadcast %c0_i32 : i32 to vector<1x1x8xi32>
    %10 = arith.cmpi eq, %8, %9 : vector<1x1x8xi32>
    %11 = arith.extui %10 : vector<1x1x8xi1> to vector<1x1x8xi32>
    %12 = arith.sitofp %11 : vector<1x1x8xi32> to vector<1x1x8xf32>
    %c1_i32 = arith.constant 1 : i32
    %13 = vector.broadcast %c1_i32 : i32 to vector<1x1x8xi32>
    %14 = arith.cmpi eq, %8, %13 : vector<1x1x8xi32>
    %15 = arith.extui %14 : vector<1x1x8xi1> to vector<1x1x8xi32>
    %16 = arith.sitofp %15 : vector<1x1x8xi32> to vector<1x1x8xf32>
    %c2_i32 = arith.constant 2 : i32
    %17 = vector.broadcast %c2_i32 : i32 to vector<1x1x8xi32>
    %18 = arith.cmpi eq, %8, %17 : vector<1x1x8xi32>
    %19 = arith.extui %18 : vector<1x1x8xi1> to vector<1x1x8xi32>
    %20 = arith.sitofp %19 : vector<1x1x8xi32> to vector<1x1x8xf32>
    %c3_i32 = arith.constant 3 : i32
    %21 = vector.broadcast %c3_i32 : i32 to vector<1x1x8xi32>
    %22 = arith.cmpi eq, %8, %21 : vector<1x1x8xi32>
    %23 = arith.extui %22 : vector<1x1x8xi1> to vector<1x1x8xi32>
    %24 = arith.sitofp %23 : vector<1x1x8xi32> to vector<1x1x8xf32>
    %c4_i32 = arith.constant 4 : i32
    %25 = vector.broadcast %c4_i32 : i32 to vector<1x1x8xi32>
    %26 = arith.cmpi eq, %8, %25 : vector<1x1x8xi32>
    %27 = arith.extui %26 : vector<1x1x8xi1> to vector<1x1x8xi32>
    %28 = arith.sitofp %27 : vector<1x1x8xi32> to vector<1x1x8xf32>
    %c5_i32 = arith.constant 5 : i32
    %29 = vector.broadcast %c5_i32 : i32 to vector<1x1x8xi32>
    %30 = arith.cmpi eq, %8, %29 : vector<1x1x8xi32>
    %31 = arith.extui %30 : vector<1x1x8xi1> to vector<1x1x8xi32>
    %32 = arith.sitofp %31 : vector<1x1x8xi32> to vector<1x1x8xf32>
    %c0 = arith.constant 0 : index
    %c4 = arith.constant 4 : index
    %c0_0 = arith.constant 0 : index
    %c0_1 = arith.constant 0 : index
    %33 = vector.load %arg2[%c0, %c4, %c0_0, %c0_1] : memref<1x6x8x8xf32, #tpu.memory_space<vmem>>, vector<1x1x8x8xf32>
    %34 = vector.shape_cast %33 : vector<1x1x8x8xf32> to vector<1x8x8xf32>
    %cst = arith.constant 2.500000e-01 : f32
    %35 = vector.broadcast %cst : f32 to vector<1x8x8xf32>
    %36 = arith.cmpf ogt, %34, %35 : vector<1x8x8xf32>
    %cst_2 = arith.constant -1.000000e+30 : f32
    %37 = vector.broadcast %cst_2 : f32 to vector<1x8x8xf32>
    %38 = arith.select %36, %34, %37 : vector<1x8x8xi1>, vector<1x8x8xf32>
    %c0_3 = arith.constant 0 : index
    %c0_4 = arith.constant 0 : index
    %c0_5 = arith.constant 0 : index
    %39 = vector.load %arg4[%c0_3, %c0_4, %c0_5] : memref<1x8x8xf32, #tpu.memory_space<vmem>>, vector<1x8x8xf32>
    tpu.vector_store %arg4[%c0_3, %c0_4, %c0_5], %38 {strides = array<i32>} : memref<1x8x8xf32, #tpu.memory_space<vmem>>, vector<1x8x8xf32>,
    %cst_6 = arith.constant -1.000000e+00 : f32
    %40 = vector.broadcast %cst_6 : f32 to vector<1x56x8xf32>
    %c0_7 = arith.constant 0 : index
    %c0_8 = arith.constant 0 : index
    %c0_9 = arith.constant 0 : index
    %41 = vector.load %arg3[%c0_7, %c0_8, %c0_9] : memref<1x56x8xf32, #tpu.memory_space<vmem>>, vector<1x56x8xf32>
    tpu.vector_store %arg3[%c0_7, %c0_8, %c0_9], %40 {strides = array<i32>} : memref<1x56x8xf32, #tpu.memory_space<vmem>>, vector<1x56x8xf32>,
    %c0_i32_10 = arith.constant 0 : i32
    %42 = arith.subi %1, %c0_i32_10 : i32
    %c1_i32_11 = arith.constant 1 : i32
    %c1_i32_12 = arith.constant 1 : i32
    %43 = arith.subi %c1_i32_11, %c1_i32_12 : i32
    %44 = arith.addi %42, %43 : i32
    %c1_i32_13 = arith.constant 1 : i32
    %45 = arith.divsi %44, %c1_i32_13 : i32
    %c1_i32_14 = arith.constant 1 : i32
    %c0_i32_15 = arith.constant 0 : i32
    %c0_i32_16 = arith.constant 0 : i32
    %46 = arith.subi %45, %c0_i32_16 : i32
    %47 = arith.addi %c0_i32_16, %46 : i32
    %c1_i32_17 = arith.constant 1 : i32
    scf.for %arg5 = %c0_i32_16 to %47 step %c1_i32_17  : i32 {
      %48 = arith.muli %arg5, %c1_i32_14 : i32
      %49 = arith.addi %c0_i32_15, %48 : i32
      %c0_18 = arith.constant 0 : index
      %c0_19 = arith.constant 0 : index
      %c0_20 = arith.constant 0 : index
      %50 = vector.load %arg4[%c0_18, %c0_19, %c0_20] : memref<1x8x8xf32, #tpu.memory_space<vmem>>, vector<1x8x8xf32>
      %cst_21 = arith.constant dense<0xFF800000> : vector<1x8xf32>
      %51 = vector.multi_reduction <maximumf>, %50, %cst_21 [2] : vector<1x8x8xf32> to vector<1x8xf32>
      %52 = vector.shape_cast %51 : vector<1x8xf32> to vector<1x8x1xf32>
      %cst_22 = arith.constant dense<0xFF800000> : vector<1x1xf32>
      %53 = vector.multi_reduction <maximumf>, %52, %cst_22 [1] : vector<1x8x1xf32> to vector<1x1xf32>
      %54 = vector.shape_cast %53 : vector<1x1xf32> to vector<1x1x1xf32>
      %cst_23 = arith.constant -1.000000e+29 : f32
      %55 = vector.broadcast %cst_23 : f32 to vector<1x1x1xf32>
      %56 = arith.cmpf ogt, %54, %55 : vector<1x1x1xf32>
      %57 = vector.broadcast %54 : vector<1x1x1xf32> to vector<1x8x8xf32>
      %58 = arith.cmpf oge, %50, %57 : vector<1x8x8xf32>
      %c64_i32 = arith.constant 64 : i32
      %59 = vector.broadcast %c64_i32 : i32 to vector<1x8x8xi32>
      %60 = arith.select %58, %6, %59 : vector<1x8x8xi1>, vector<1x8x8xi32>
      %cst_24 = arith.constant dense<2147483647> : vector<1x8xi32>
      %61 = vector.multi_reduction <minsi>, %60, %cst_24 [2] : vector<1x8x8xi32> to vector<1x8xi32>
      %62 = vector.shape_cast %61 : vector<1x8xi32> to vector<1x8x1xi32>
      %cst_25 = arith.constant dense<2147483647> : vector<1x1xi32>
      %63 = vector.multi_reduction <minsi>, %62, %cst_25 [1] : vector<1x8x1xi32> to vector<1x1xi32>
      %64 = vector.shape_cast %63 : vector<1x1xi32> to vector<1x1x1xi32>
      %65 = vector.broadcast %64 : vector<1x1x1xi32> to vector<1x8x8xi32>
      %66 = arith.cmpi eq, %6, %65 : vector<1x8x8xi32>
      %c0_26 = arith.constant 0 : index
      %c0_27 = arith.constant 0 : index
      %c0_28 = arith.constant 0 : index
      %c0_29 = arith.constant 0 : index
      %67 = vector.load %arg2[%c0_26, %c0_27, %c0_28, %c0_29] : memref<1x6x8x8xf32, #tpu.memory_space<vmem>>, vector<1x1x8x8xf32>
      %68 = vector.shape_cast %67 : vector<1x1x8x8xf32> to vector<1x8x8xf32>
      %c0_30 = arith.constant 0 : index
      %c1 = arith.constant 1 : index
      %c0_31 = arith.constant 0 : index
      %c0_32 = arith.constant 0 : index
      %69 = vector.load %arg2[%c0_30, %c1, %c0_31, %c0_32] : memref<1x6x8x8xf32, #tpu.memory_space<vmem>>, vector<1x1x8x8xf32>
      %70 = vector.shape_cast %69 : vector<1x1x8x8xf32> to vector<1x8x8xf32>
      %c0_33 = arith.constant 0 : index
      %c2 = arith.constant 2 : index
      %c0_34 = arith.constant 0 : index
      %c0_35 = arith.constant 0 : index
      %71 = vector.load %arg2[%c0_33, %c2, %c0_34, %c0_35] : memref<1x6x8x8xf32, #tpu.memory_space<vmem>>, vector<1x1x8x8xf32>
      %72 = vector.shape_cast %71 : vector<1x1x8x8xf32> to vector<1x8x8xf32>
      %c0_36 = arith.constant 0 : index
      %c3 = arith.constant 3 : index
      %c0_37 = arith.constant 0 : index
      %c0_38 = arith.constant 0 : index
      %73 = vector.load %arg2[%c0_36, %c3, %c0_37, %c0_38] : memref<1x6x8x8xf32, #tpu.memory_space<vmem>>, vector<1x1x8x8xf32>
      %74 = vector.shape_cast %73 : vector<1x1x8x8xf32> to vector<1x8x8xf32>
      %c0_39 = arith.constant 0 : index
      %c5 = arith.constant 5 : index
      %c0_40 = arith.constant 0 : index
      %c0_41 = arith.constant 0 : index
      %75 = vector.load %arg2[%c0_39, %c5, %c0_40, %c0_41] : memref<1x6x8x8xf32, #tpu.memory_space<vmem>>, vector<1x1x8x8xf32>
      %76 = vector.shape_cast %75 : vector<1x1x8x8xf32> to vector<1x8x8xf32>
      %cst_42 = arith.constant 0.000000e+00 : f32
      %77 = vector.broadcast %cst_42 : f32 to vector<1x8x8xf32>
      %78 = arith.select %66, %68, %77 : vector<1x8x8xi1>, vector<1x8x8xf32>
      %cst_43 = arith.constant dense<0.000000e+00> : vector<1x8xf32>
      %79 = vector.multi_reduction <add>, %78, %cst_43 [2] : vector<1x8x8xf32> to vector<1x8xf32>
      %80 = vector.shape_cast %79 : vector<1x8xf32> to vector<1x8x1xf32>
      %cst_44 = arith.constant dense<0.000000e+00> : vector<1x1xf32>
      %81 = vector.multi_reduction <add>, %80, %cst_44 [1] : vector<1x8x1xf32> to vector<1x1xf32>
      %82 = vector.shape_cast %81 : vector<1x1xf32> to vector<1x1x1xf32>
      %cst_45 = arith.constant 0.000000e+00 : f32
      %83 = vector.broadcast %cst_45 : f32 to vector<1x8x8xf32>
      %84 = arith.select %66, %70, %83 : vector<1x8x8xi1>, vector<1x8x8xf32>
      %cst_46 = arith.constant dense<0.000000e+00> : vector<1x8xf32>
      %85 = vector.multi_reduction <add>, %84, %cst_46 [2] : vector<1x8x8xf32> to vector<1x8xf32>
      %86 = vector.shape_cast %85 : vector<1x8xf32> to vector<1x8x1xf32>
      %cst_47 = arith.constant dense<0.000000e+00> : vector<1x1xf32>
      %87 = vector.multi_reduction <add>, %86, %cst_47 [1] : vector<1x8x1xf32> to vector<1x1xf32>
      %88 = vector.shape_cast %87 : vector<1x1xf32> to vector<1x1x1xf32>
      %cst_48 = arith.constant 0.000000e+00 : f32
      %89 = vector.broadcast %cst_48 : f32 to vector<1x8x8xf32>
      %90 = arith.select %66, %72, %89 : vector<1x8x8xi1>, vector<1x8x8xf32>
      %cst_49 = arith.constant dense<0.000000e+00> : vector<1x8xf32>
      %91 = vector.multi_reduction <add>, %90, %cst_49 [2] : vector<1x8x8xf32> to vector<1x8xf32>
      %92 = vector.shape_cast %91 : vector<1x8xf32> to vector<1x8x1xf32>
      %cst_50 = arith.constant dense<0.000000e+00> : vector<1x1xf32>
      %93 = vector.multi_reduction <add>, %92, %cst_50 [1] : vector<1x8x1xf32> to vector<1x1xf32>
      %94 = vector.shape_cast %93 : vector<1x1xf32> to vector<1x1x1xf32>
      %cst_51 = arith.constant 0.000000e+00 : f32
      %95 = vector.broadcast %cst_51 : f32 to vector<1x8x8xf32>
      %96 = arith.select %66, %74, %95 : vector<1x8x8xi1>, vector<1x8x8xf32>
      %cst_52 = arith.constant dense<0.000000e+00> : vector<1x8xf32>
      %97 = vector.multi_reduction <add>, %96, %cst_52 [2] : vector<1x8x8xf32> to vector<1x8xf32>
      %98 = vector.shape_cast %97 : vector<1x8xf32> to vector<1x8x1xf32>
      %cst_53 = arith.constant dense<0.000000e+00> : vector<1x1xf32>
      %99 = vector.multi_reduction <add>, %98, %cst_53 [1] : vector<1x8x1xf32> to vector<1x1xf32>
      %100 = vector.shape_cast %99 : vector<1x1xf32> to vector<1x1x1xf32>
      %cst_54 = arith.constant 0.000000e+00 : f32
      %101 = vector.broadcast %cst_54 : f32 to vector<1x8x8xf32>
      %102 = arith.select %66, %76, %101 : vector<1x8x8xi1>, vector<1x8x8xf32>
      %cst_55 = arith.constant dense<0.000000e+00> : vector<1x8xf32>
      %103 = vector.multi_reduction <add>, %102, %cst_55 [2] : vector<1x8x8xf32> to vector<1x8xf32>
      %104 = vector.shape_cast %103 : vector<1x8xf32> to vector<1x8x1xf32>
      %cst_56 = arith.constant dense<0.000000e+00> : vector<1x1xf32>
      %105 = vector.multi_reduction <add>, %104, %cst_56 [1] : vector<1x8x1xf32> to vector<1x1xf32>
      %106 = vector.shape_cast %105 : vector<1x1xf32> to vector<1x1x1xf32>
      %107 = arith.subf %94, %82 : vector<1x1x1xf32>
      %108 = arith.subf %100, %88 : vector<1x1x1xf32>
      %109 = arith.mulf %107, %108 : vector<1x1x1xf32>
      %110 = arith.subf %72, %68 : vector<1x8x8xf32>
      %111 = arith.subf %74, %70 : vector<1x8x8xf32>
      %112 = arith.mulf %110, %111 : vector<1x8x8xf32>
      %113 = vector.broadcast %94 : vector<1x1x1xf32> to vector<1x8x8xf32>
      %114 = arith.minimumf %113, %72 : vector<1x8x8xf32>
      %115 = vector.broadcast %82 : vector<1x1x1xf32> to vector<1x8x8xf32>
      %116 = arith.maximumf %115, %68 : vector<1x8x8xf32>
      %117 = arith.subf %114, %116 : vector<1x8x8xf32>
      %cst_57 = arith.constant 0.000000e+00 : f32
      %118 = vector.broadcast %cst_57 : f32 to vector<1x8x8xf32>
      %119 = arith.maximumf %117, %118 : vector<1x8x8xf32>
      %120 = vector.broadcast %100 : vector<1x1x1xf32> to vector<1x8x8xf32>
      %121 = arith.minimumf %120, %74 : vector<1x8x8xf32>
      %122 = vector.broadcast %88 : vector<1x1x1xf32> to vector<1x8x8xf32>
      %123 = arith.maximumf %122, %70 : vector<1x8x8xf32>
      %124 = arith.subf %121, %123 : vector<1x8x8xf32>
      %cst_58 = arith.constant 0.000000e+00 : f32
      %125 = vector.broadcast %cst_58 : f32 to vector<1x8x8xf32>
      %126 = arith.maximumf %124, %125 : vector<1x8x8xf32>
      %127 = arith.mulf %119, %126 : vector<1x8x8xf32>
      %128 = vector.broadcast %109 : vector<1x1x1xf32> to vector<1x8x8xf32>
      %129 = arith.addf %128, %112 : vector<1x8x8xf32>
      %130 = arith.subf %129, %127 : vector<1x8x8xf32>
      %cst_59 = arith.constant 4.500000e-01 : f32
      %131 = vector.broadcast %cst_59 : f32 to vector<1x8x8xf32>
      %132 = arith.mulf %131, %130 : vector<1x8x8xf32>
      %133 = arith.cmpf oge, %127, %132 : vector<1x8x8xf32>
      %134 = arith.ori %133, %66 : vector<1x8x8xi1>
      %135 = vector.broadcast %56 : vector<1x1x1xi1> to vector<1x8x8xi1>
      %136 = arith.andi %135, %134 : vector<1x8x8xi1>
      %cst_60 = arith.constant -1.000000e+30 : f32
      %137 = vector.broadcast %cst_60 : f32 to vector<1x8x8xf32>
      %138 = arith.select %136, %137, %50 : vector<1x8x8xi1>, vector<1x8x8xf32>
      %c0_61 = arith.constant 0 : index
      %c0_62 = arith.constant 0 : index
      %c0_63 = arith.constant 0 : index
      %139 = vector.load %arg4[%c0_61, %c0_62, %c0_63] : memref<1x8x8xf32, #tpu.memory_space<vmem>>, vector<1x8x8xf32>
      tpu.vector_store %arg4[%c0_61, %c0_62, %c0_63], %138 {strides = array<i32>} : memref<1x8x8xf32, #tpu.memory_space<vmem>>, vector<1x8x8xf32>,
      %140 = vector.broadcast %82 : vector<1x1x1xf32> to vector<1x1x8xf32>
      %141 = arith.mulf %140, %12 : vector<1x1x8xf32>
      %142 = vector.broadcast %88 : vector<1x1x1xf32> to vector<1x1x8xf32>
      %143 = arith.mulf %142, %16 : vector<1x1x8xf32>
      %144 = arith.addf %141, %143 : vector<1x1x8xf32>
      %145 = vector.broadcast %94 : vector<1x1x1xf32> to vector<1x1x8xf32>
      %146 = arith.mulf %145, %20 : vector<1x1x8xf32>
      %147 = arith.addf %144, %146 : vector<1x1x8xf32>
      %148 = vector.broadcast %100 : vector<1x1x1xf32> to vector<1x1x8xf32>
      %149 = arith.mulf %148, %24 : vector<1x1x8xf32>
      %150 = arith.addf %147, %149 : vector<1x1x8xf32>
      %151 = vector.broadcast %54 : vector<1x1x1xf32> to vector<1x1x8xf32>
      %152 = arith.mulf %151, %28 : vector<1x1x8xf32>
      %153 = arith.addf %150, %152 : vector<1x1x8xf32>
      %154 = vector.broadcast %106 : vector<1x1x1xf32> to vector<1x1x8xf32>
      %155 = arith.mulf %154, %32 : vector<1x1x8xf32>
      %156 = arith.addf %153, %155 : vector<1x1x8xf32>
      %157 = vector.broadcast %49 : i32 to vector<1x56x1xi32>
      %158 = arith.cmpi eq, %7, %157 : vector<1x56x1xi32>
      %159 = vector.broadcast %56 : vector<1x1x1xi1> to vector<1x56x1xi1>
      %160 = arith.andi %158, %159 : vector<1x56x1xi1>
      %c0_64 = arith.constant 0 : index
      %c0_65 = arith.constant 0 : index
      %c0_66 = arith.constant 0 : index
      %161 = vector.load %arg3[%c0_64, %c0_65, %c0_66] : memref<1x56x8xf32, #tpu.memory_space<vmem>>, vector<1x56x8xf32>
      %162 = vector.shape_cast %160 : vector<1x56x1xi1> to vector<1x56x1xi1>
      %163 = vector.broadcast %162 : vector<1x56x1xi1> to vector<1x56x8xi1>
      %164 = vector.shape_cast %156 : vector<1x1x8xf32> to vector<1x1x8xf32>
      %165 = vector.broadcast %164 : vector<1x1x8xf32> to vector<1x56x8xf32>
      %166 = arith.select %163, %165, %161 : vector<1x56x8xi1>, vector<1x56x8xf32>
      %c0_67 = arith.constant 0 : index
      %c0_68 = arith.constant 0 : index
      %c0_69 = arith.constant 0 : index
      %167 = vector.load %arg3[%c0_67, %c0_68, %c0_69] : memref<1x56x8xf32, #tpu.memory_space<vmem>>, vector<1x56x8xf32>
      tpu.vector_store %arg3[%c0_67, %c0_68, %c0_69], %166 {strides = array<i32>} : memref<1x56x8xf32, #tpu.memory_space<vmem>>, vector<1x56x8xf32>,
    }
    return
  }
  func.func @transform_0(%arg0: i32, %arg1: memref<2xi32, #tpu.memory_space<smem>>) -> (i32, i32, i32, i32) {
    %c0_i32 = arith.constant 0 : i32
    %c0_i32_0 = arith.constant 0 : i32
    %c0_i32_1 = arith.constant 0 : i32
    %c0_i32_2 = arith.constant 0 : i32
    return %arg0, %c0_i32, %c0_i32_0, %c0_i32_1 : i32, i32, i32, i32
  }
  func.func @transform_1(%arg0: i32, %arg1: memref<2xi32, #tpu.memory_space<smem>>) -> (i32, i32, i32) {
    %c0_i32 = arith.constant 0 : i32
    %c0_i32_0 = arith.constant 0 : i32
    %c0_i32_1 = arith.constant 0 : i32
    return %arg0, %c0_i32, %c0_i32_0 : i32, i32, i32
  }
}

</mosaic_0001>

<llo_original>
// kernel: tpu_custom_call.1
$region0: #{tpu_custom_call.1}
  #allocation0 [shape = 'u32[]', space=smem, size = 0x4, offset = 0x4, fixed_abs, tag = 'smem constant byte address 0x4 - core index']
  #allocation1 [shape = 'u32[72,128]{1,0:T(1,128)}', space=vmem, size = 0x9000, scoped, tag = 'internal scratch']
  #allocation2 [shape = 'f32[1,8,8]{2,1,0:T(8,128)}', space=vmem, size = 0x1000, scoped, tag = 'scratch operand']
  #allocation3 [shape = 's32[1]{0}', space=sflag, size = 0x4, scoped, tag = 'scoped memory for tpu_custom_call.1']
  #allocation4 [shape = 'u8[512]{0}', space=smem, size = 0x200, scoped, tag = 'prefetched SMEM operand 0']
  %s0 = inlined_call_operand.hbm [shape: s32[2], index: 0, kind: input, shape index: {}]
  %s1 = inlined_call_operand.hbm [shape: f32[2,6,8,8], index: 1, kind: input, shape index: {}]
  %s2 = inlined_call_operand.vmem [shape: f32[2,56,8], index: 2, kind: output, shape index: {}]
  %s3 = sld [smem:[#allocation0]]
  $region48: #{tpu_custom_call.1} parent=0
    _
  %s5 = ssub.s32 1, %s3
  %s6 = scalar_select 0, %s5, %s3
  %s8 = sshll.u32 %s0, 4
  %s9 = int_to_ptr.hbm [resolvable:$true] %s8
  %11 = dma.hbm_to_smem %s9, 16, [#allocation4], [#allocation3]
  %13 = dma.done [#allocation3], 16
  %14 = sfence
  $region1: #{tpu_custom_call.1} parent=0
    #allocation5 [shape = 'u8[49152]{0}', space=vmem, size = 0xc000, scoped, tag = 'input window, operand 1']
    #allocation6 [shape = 's32[2]{0}', space=sflag, size = 0x8, scoped, tag = 'scoped memory for tpu_custom_call.1']
    %15 = vsyncpa [#allocation6], 0
    %s16 = scalar_lea.sflag [#allocation6], 1
    %17 = vsyncpa %s16, 0
    loop: start=0, step=1, limit=4
    $region2: #{tpu_custom_call.1} parent=1 // loop_pre_header
      _
    $region3: #{tpu_custom_call.1} parent=1 // loop_header
      %s19 = sphi 0, %s23
      %p20 = scmp.ge.s32.totalorder %s19, 4
      %s29 = sphi 0, %s31
      %s32 = sphi 0, %s29
      %s33 = sphi 0, %s32
      %s49 = sphi 0, %s33
      %s55 = sphi 0, %s57
      %s58 = sphi 0, %s55
      %s59 = sphi 0, %s58
      %s75 = sphi 0, %s59
    $region4: #{tpu_custom_call.1} parent=1 // loop_header_branch
      %22 = sbr.rel (%p20) target = $region8
    $region5: #{tpu_custom_call.1} parent=1 // loop_body
      %s24 = ssub.s32 %s19, 1
      %s25 = ssub.s32 %s19, 2
      %s26 = sadd.s32 %s19, 1
      %s27 = ssub.s32 %s19, %s26
      %p28 = scmp.eq.s32.totalorder %s27, 0
      %s30 = sadd.s32 %s29, 1
      %s31 = scalar_select %p28, %s29, %s30
      %p34 = pneg %p28
      %p35 = scmp.eq.s32.totalorder %s19, 1
      %p36 = por %p34, %p35
      %p37 = scmp.ne.s32.totalorder %s29, %s32
      %p38 = scmp.eq.s32.totalorder %s19, 0
      %p39 = por %p37, %p38
      %p40 = scmp.ne.s32.totalorder %s29, %s32
      %p41 = scmp.eq.s32.totalorder %s24, 1
      %p42 = por %p40, %p41
      %p43 = scmp.ne.s32.totalorder %s32, %s33
      %p44 = scmp.eq.s32.totalorder %s24, 0
      %p45 = por %p43, %p44
      %p46 = scmp.ne.s32.totalorder %s32, %s33
      %p47 = scmp.eq.s32.totalorder %s25, 1
      %p48 = por %p46, %p47
      %p50 = scmp.ne.s32.totalorder %s33, %s49
      %p51 = scmp.eq.s32.totalorder %s25, 0
      %p52 = por %p50, %p51
      %s53 = ssub.s32 %s19, %s26
      %p54 = scmp.eq.s32.totalorder %s53, 0
      %s56 = sadd.s32 %s55, 1
      %s57 = scalar_select %p54, %s55, %s56
      %p60 = pneg %p54
      %p61 = scmp.eq.s32.totalorder %s19, 1
      %p62 = por %p60, %p61
      %p63 = scmp.ne.s32.totalorder %s55, %s58
      %p64 = scmp.eq.s32.totalorder %s19, 0
      %p65 = por %p63, %p64
      %p66 = scmp.ne.s32.totalorder %s55, %s58
      %p67 = scmp.eq.s32.totalorder %s24, 1
      %p68 = por %p66, %p67
      %p69 = scmp.ne.s32.totalorder %s58, %s59
      %p70 = scmp.eq.s32.totalorder %s24, 0
      %p71 = por %p69, %p70
      %p72 = scmp.ne.s32.totalorder %s58, %s59
      %p73 = scmp.eq.s32.totalorder %s25, 1
      %p74 = por %p72, %p73
      %p76 = scmp.ne.s32.totalorder %s59, %s75
      %p77 = scmp.eq.s32.totalorder %s25, 0
      %p78 = por %p76, %p77
      %p79 = scmp.le.s32.totalorder 1, %s19
      %p80 = scmp.lt.s32.totalorder %s19, 3
      %p81 = pnand %p79, %p80
      %p82 = pneg %p81
      // Predicated region
      $region9: #{tpu_custom_call.1} parent=5 // pred_check
        _
      $region10: #{tpu_custom_call.1} parent=5 // pred_check_branch
        %84 = sbr.rel (%p81) target = $region12
      $region11: #{tpu_custom_call.1} parent=5 // pred_region
        %s85 = ssub.s32 %s19, 1
      $region12: #{tpu_custom_call.1} parent=5 // pred_fallthru
        _
      %p86 = scmp.lt.s32.totalorder %s19, 2
      // Predicated region
      $region13: #{tpu_custom_call.1} parent=5 // pred_check
        %p87 = pneg %p86
      $region14: #{tpu_custom_call.1} parent=5 // pred_check_branch
        %89 = sbr.rel (%p87) target = $region16
      $region15: #{tpu_custom_call.1} parent=5 // pred_region
        // Predicated region
        $region17: #{tpu_custom_call.1} parent=15 // pred_check
          %p90 = pneg %p39
        $region18: #{tpu_custom_call.1} parent=15 // pred_check_branch
          %92 = sbr.rel (%p90) target = $region20
        $region19: #{tpu_custom_call.1} parent=15 // pred_region
          %s93 = sand.u32 %s29, 1
          %s94 = scalar_lea.sflag [#allocation6], %s93
          %s95 = sand.u32 %s29, 1
          %s96 = smul.addr %s95, 48
          %s97 = scalar_lea.vmem [#allocation5], %s96
          %99 = vsyncadd %s94, 0
          %s100 = smul.addr %s19, 6
          %s101 = smul.addr %s100, 8
          %s102 = scalar_lea.hbm %s1, %s101
          %s103 = sshll.u32 %s102, 4
          %s104 = int_to_ptr.hbm [resolvable:$true] %s103
          %s105 = sshll.u32 %s97, 4
          %s106 = int_to_ptr.vmem [resolvable:$true] %s105
          %111 = dma.hbm_to_vmem [thread:$0]  %s104, 768, %s106, %s94, 128, 128, 8
        $region20: #{tpu_custom_call.1} parent=15 // pred_fallthru
          _
      $region16: #{tpu_custom_call.1} parent=5 // pred_fallthru
        _
      %p112 = scmp.le.s32.totalorder 1, %s19
      %p113 = scmp.lt.s32.totalorder %s19, 3
      %p114 = pnand %p112, %p113
      %p115 = pneg %p114
      // Predicated region
      $region21: #{tpu_custom_call.1} parent=5 // pred_check
        _
      $region22: #{tpu_custom_call.1} parent=5 // pred_check_branch
        %117 = sbr.rel (%p114) target = $region24
      $region23: #{tpu_custom_call.1} parent=5 // pred_region
        %s118 = ssub.s32 %s19, 1
        %s119 = sand.u32 %s32, 1
        %s120 = scalar_lea.sflag [#allocation6], %s119
        %s121 = sand.u32 %s32, 1
        %s122 = smul.addr %s121, 48
        %s123 = scalar_lea.vmem [#allocation5], %s122
        // Predicated region
        $region25: #{tpu_custom_call.1} parent=23 // pred_check
          %p124 = pneg %p45
        $region26: #{tpu_custom_call.1} parent=23 // pred_check_branch
          %126 = sbr.rel (%p124) target = $region28
        $region27: #{tpu_custom_call.1} parent=23 // pred_region
          %128 = dma.done %s120, 768
        $region28: #{tpu_custom_call.1} parent=23 // pred_fallthru
          _
        %s129 = sand.u32 %s32, 1
        %s130 = scalar_lea.sflag [#allocation6], %s129
        %s131 = sand.u32 %s32, 1
        %s132 = smul.addr %s131, 48
        %s133 = scalar_lea.vmem [#allocation5], %s132
        %p134 = pneg %p45
        %p135 = pneg %p42
        %p136 = pneg %p71
        %p137 = pneg %p68
        %p138 = scmp.lt.s32.totalorder %s24, 1
        %s139 = scalar_select %p138, %s24, 1
        %s140 = smul.addr %s139, 7
        %s141 = smul.addr %s140, 8
        %s142 = scalar_lea.vmem %s2, %s141
        %p143 = scmp.lt.s32.totalorder %s24, 1
        %s144 = scalar_select %p143, %s24, 1
        %s145 = smul.addr %s144, 7
        %s146 = smul.addr %s145, 8
        %s147 = scalar_lea.vmem %s2, %s146
        %s148 = sld [smem:[#allocation4 + %s24]]
        %v149 = vlaneseq
        %v150 = vshrl.u32 %v149, 7
        %v151 = vmul.u32 %v150, 8
        %v152 = vlaneseq
        %v153 = vand.u32 %v152, 127
        %v154 = vadd.s32 %v151, %v153
        %v155 = vadd.s32 %v150, 8
        %v156 = vadd.s32 %v150, 16
        %v157 = vadd.s32 %v150, 24
        %v158 = vadd.s32 %v150, 32
        %v159 = vadd.s32 %v150, 40
        %v160 = vadd.s32 %v150, 48
        %vm161 = vcmp.eq.s32.totalorder %v153, 0
        %v162 = vsel %vm161, 1, 0
        %v163 = vcvt.s32.f32 %v162
        %vm164 = vcmp.eq.s32.totalorder %v153, 1
        %v165 = vsel %vm164, 1, 0
        %v166 = vcvt.s32.f32 %v165
        %vm167 = vcmp.eq.s32.totalorder %v153, 2
        %v168 = vsel %vm167, 1, 0
        %v169 = vcvt.s32.f32 %v168
        %vm170 = vcmp.eq.s32.totalorder %v153, 3
        %v171 = vsel %vm170, 1, 0
        %v172 = vcvt.s32.f32 %v171
        %vm173 = vcmp.eq.s32.totalorder %v153, 4
        %v174 = vsel %vm173, 1, 0
        %v175 = vcvt.s32.f32 %v174
        %vm176 = vcmp.eq.s32.totalorder %v153, 5
        %v177 = vsel %vm176, 1, 0
        %v178 = vcvt.s32.f32 %v177
        %s179 = scalar_lea.vmem %s123, 32 [#allocation5]
        %v180 = vld [vmem:[%s179] sm:$0xff]
        %vm181 = vcmp.gt.f32.partialorder %v180, 0.25
        %v182 = vsel %vm181, %v180, -1e+30
        %vm183 = vcmask 64512
        %184 = vst.msk [vmem:[#allocation2] sm:$0xff] %vm183, %v182
        %185 = vst.msk [vmem:[%s147] sm:$0xff] %vm183, -1.0
        %186 = vst.msk [vmem:[%s147 + $0x8] sm:$0xff] %vm183, -1.0
        %187 = vst.msk [vmem:[%s147 + $0x10] sm:$0xff] %vm183, -1.0
        %188 = vst.msk [vmem:[%s147 + $0x18] sm:$0xff] %vm183, -1.0
        %189 = vst.msk [vmem:[%s147 + $0x20] sm:$0xff] %vm183, -1.0
        %190 = vst.msk [vmem:[%s147 + $0x28] sm:$0xff] %vm183, -1.0
        %191 = vst.msk [vmem:[%s147 + $0x30] sm:$0xff] %vm183, -1.0
        // While loop
        $region29: #{tpu_custom_call.1} parent=23 // loop_pre_header
          _
        $region30: #{tpu_custom_call.1} parent=23 // loop_header
          %s193 = sphi 0, %s195
          %p194 = scmp.ge.s32.totalorder %s193, %s148
        $region31: #{tpu_custom_call.1} parent=23 // loop_header_branch
          %197 = sbr.rel (%p194) target = $region35
        $region32: #{tpu_custom_call.1} parent=23 // loop_body
          %v198 = vld [vmem:[#allocation2] sm:$0xff]
          %v199 = vsel %vm183, %v198, -inf
          %200 = vmax.xlane.f32.xlu0 %v199
          %v201 = vpop.xlane.xlu0 %200
          %v202 = vrot.slane %v201, 4
          %v203 = vmax.f32 %v201, %v202
          %v204 = vrot.slane %v203, 2
          %v205 = vmax.f32 %v203, %v204
          %v206 = vrot.slane %v205, 1
          %v207 = vmax.f32 %v205, %v206
          %vm208 = vcmp.gt.f32.partialorder %v207, -1e+29
          %vm209 = vcmp.ge.f32.partialorder %v198, %v207
          %v210 = vsel %vm209, %v154, 64
          %v211 = vsel %vm183, %v210, 2147483647
          %v212 = vand.u32 %v211, 65535
          %v213 = vshra.s32 %v211, 16
          %v214 = vcvt.s32.f32 %v212
          %v215 = vcvt.s32.f32 %v213
          %216 = vmin.xlane.f32.xlu0 %v215
          %v217 = vpop.xlane.xlu0 %216
          %vm218 = vcmp.eq.f32.partialorder %v215, %v217
          %v219 = vsel %vm218, %v214, inf
          %220 = vmin.xlane.f32.xlu0 %v219
          %v221 = vpop.xlane.xlu0 %220
          %v222 = vcvt.f32.s32 %v221
          %v223 = vcvt.f32.s32 %v217
          %v224 = vshll.u32 %v223, 16
          %v225 = vadd.s32 %v224, %v222
          %v226 = vrot.slane %v225, 4
          %vm227 = vcmp.lt.s32.totalorder %v225, %v226
          %v228 = vsel %vm227, %v225, %v226
          %v229 = vrot.slane %v228, 2
          %vm230 = vcmp.lt.s32.totalorder %v228, %v229
          %v231 = vsel %vm230, %v228, %v229
          %v232 = vrot.slane %v231, 1
          %vm233 = vcmp.lt.s32.totalorder %v231, %v232
          %v234 = vsel %vm233, %v231, %v232
          %vm235 = vcmp.eq.s32.totalorder %v154, %v234
          %v236 = vld [vmem:[%s123] sm:$0xff]
          %s237 = scalar_lea.vmem %s123, 8 [#allocation5]
          %v238 = vld [vmem:[%s237] sm:$0xff]
          %s239 = scalar_lea.vmem %s123, 16 [#allocation5]
          %v240 = vld [vmem:[%s239] sm:$0xff]
          %s241 = scalar_lea.vmem %s123, 24 [#allocation5]
          %v242 = vld [vmem:[%s241] sm:$0xff]
          %s243 = scalar_lea.vmem %s123, 40 [#allocation5]
          %v244 = vld [vmem:[%s243] sm:$0xff]
          %v245 = vsel %vm235, %v236, 0.0
          %v246 = vsel %vm183, %v245, 0.0
          %247 = vadd.xlane.f32.xlu0 %v246
          %v248 = vpop.xlane.xlu0 %247
          %v249 = vrot.slane %v248, 4
          %v250 = vadd.f32 %v248, %v249
          %v251 = vrot.slane %v250, 2
          %v252 = vadd.f32 %v250, %v251
          %v253 = vrot.slane %v252, 1
          %v254 = vadd.f32 %v252, %v253
          %v255 = vsel %vm235, %v238, 0.0
          %v256 = vsel %vm183, %v255, 0.0
          %257 = vadd.xlane.f32.xlu0 %v256
          %v258 = vpop.xlane.xlu0 %257
          %v259 = vrot.slane %v258, 4
          %v260 = vadd.f32 %v258, %v259
          %v261 = vrot.slane %v260, 2
          %v262 = vadd.f32 %v260, %v261
          %v263 = vrot.slane %v262, 1
          %v264 = vadd.f32 %v262, %v263
          %v265 = vsel %vm235, %v240, 0.0
          %v266 = vsel %vm183, %v265, 0.0
          %267 = vadd.xlane.f32.xlu0 %v266
          %v268 = vpop.xlane.xlu0 %267
          %v269 = vrot.slane %v268, 4
          %v270 = vadd.f32 %v268, %v269
          %v271 = vrot.slane %v270, 2
          %v272 = vadd.f32 %v270, %v271
          %v273 = vrot.slane %v272, 1
          %v274 = vadd.f32 %v272, %v273
          %v275 = vsel %vm235, %v242, 0.0
          %v276 = vsel %vm183, %v275, 0.0
          %277 = vadd.xlane.f32.xlu0 %v276
          %v278 = vpop.xlane.xlu0 %277
          %v279 = vrot.slane %v278, 4
          %v280 = vadd.f32 %v278, %v279
          %v281 = vrot.slane %v280, 2
          %v282 = vadd.f32 %v280, %v281
          %v283 = vrot.slane %v282, 1
          %v284 = vadd.f32 %v282, %v283
          %v285 = vsel %vm235, %v244, 0.0
          %v286 = vsel %vm183, %v285, 0.0
          %287 = vadd.xlane.f32.xlu0 %v286
          %v288 = vpop.xlane.xlu0 %287
          %v289 = vrot.slane %v288, 4
          %v290 = vadd.f32 %v288, %v289
          %v291 = vrot.slane %v290, 2
          %v292 = vadd.f32 %v290, %v291
          %v293 = vrot.slane %v292, 1
          %v294 = vadd.f32 %v292, %v293
          %v295 = vsub.f32 %v274, %v254
          %v296 = vsub.f32 %v284, %v264
          %v297 = vmul.f32 %v295, %v296
          %v298 = vsub.f32 %v240, %v236
          %v299 = vsub.f32 %v242, %v238
          %v300 = vmul.f32 %v298, %v299
          %v301 = vmin.f32 %v274, %v240
          %v302 = vmax.f32 %v254, %v236
          %v303 = vsub.f32 %v301, %v302
          %v304 = vmax.f32 %v303, 0.0
          %v305 = vmin.f32 %v284, %v242
          %v306 = vmax.f32 %v264, %v238
          %v307 = vsub.f32 %v305, %v306
          %v308 = vmax.f32 %v307, 0.0
          %v309 = vmul.f32 %v304, %v308
          %v310 = vadd.f32 %v297, %v300
          %v311 = vsub.f32 %v310, %v309
          %v312 = vmul.f32 %v311, 0.45
          %vm313 = vcmp.ge.f32.partialorder %v309, %v312
          %vm314 = vmor %vm313, %vm235
          %v315 = vsel %vm208, 1, 0
          %vm316 = vcmp.eq.s32.totalorder %v315, 1
          %vm317 = vmand %vm316, %vm314
          %v318 = vsel %vm317, -1e+30, %v198
          %319 = vst.msk [vmem:[#allocation2] sm:$0xff] %vm183, %v318
          %v320 = vmul.f32 %v254, %v163
          %v321 = vmul.f32 %v264, %v166
          %v322 = vadd.f32 %v320, %v321
          %v323 = vmul.f32 %v274, %v169
          %v324 = vadd.f32 %v322, %v323
          %v325 = vmul.f32 %v284, %v172
          %v326 = vadd.f32 %v324, %v325
          %v327 = vmul.f32 %v207, %v175
          %v328 = vadd.f32 %v326, %v327
          %v329 = vmul.f32 %v294, %v178
          %v330 = vadd.f32 %v328, %v329
          %v331 = vstv %s193
          %vm332 = vcmp.eq.s32.totalorder %v150, %v331
          %vm333 = vcmp.eq.s32.totalorder %v155, %v331
          %vm334 = vcmp.eq.s32.totalorder %v156, %v331
          %vm335 = vcmp.eq.s32.totalorder %v157, %v331
          %vm336 = vcmp.eq.s32.totalorder %v158, %v331
          %vm337 = vcmp.eq.s32.totalorder %v159, %v331
          %vm338 = vcmp.eq.s32.totalorder %v160, %v331
          %vm339 = vmand %vm332, %vm316
          %vm340 = vmand %vm333, %vm316
          %vm341 = vmand %vm334, %vm316
          %vm342 = vmand %vm335, %vm316
          %vm343 = vmand %vm336, %vm316
          %vm344 = vmand %vm337, %vm316
          %vm345 = vmand %vm338, %vm316
          %v346 = vld [vmem:[%s147] sm:$0xff]
          %v347 = vld [vmem:[%s147 + $0x8] sm:$0xff]
          %v348 = vld [vmem:[%s147 + $0x10] sm:$0xff]
          %v349 = vld [vmem:[%s147 + $0x18] sm:$0xff]
          %v350 = vld [vmem:[%s147 + $0x20] sm:$0xff]
          %v351 = vld [vmem:[%s147 + $0x28] sm:$0xff]
          %v352 = vld [vmem:[%s147 + $0x30] sm:$0xff]
          %v353 = vsel %vm339, 1, 0
          %v354 = vsel %vm340, 1, 0
          %v355 = vsel %vm341, 1, 0
          %v356 = vsel %vm342, 1, 0
          %v357 = vsel %vm343, 1, 0
          %v358 = vsel %vm344, 1, 0
          %v359 = vsel %vm345, 1, 0
          %vm360 = vcmp.eq.s32.totalorder %v353, 1
          %vm361 = vcmp.eq.s32.totalorder %v354, 1
          %vm362 = vcmp.eq.s32.totalorder %v355, 1
          %vm363 = vcmp.eq.s32.totalorder %v356, 1
          %vm364 = vcmp.eq.s32.totalorder %v357, 1
          %vm365 = vcmp.eq.s32.totalorder %v358, 1
          %vm366 = vcmp.eq.s32.totalorder %v359, 1
          %v367 = vsel %vm360, %v330, %v346
          %v368 = vsel %vm361, %v330, %v347
          %v369 = vsel %vm362, %v330, %v348
          %v370 = vsel %vm363, %v330, %v349
          %v371 = vsel %vm364, %v330, %v350
          %v372 = vsel %vm365, %v330, %v351
          %v373 = vsel %vm366, %v330, %v352
          %374 = vst.msk [vmem:[%s147] sm:$0xff] %vm183, %v367
          %375 = vst.msk [vmem:[%s147 + $0x8] sm:$0xff] %vm183, %v368
          %376 = vst.msk [vmem:[%s147 + $0x10] sm:$0xff] %vm183, %v369
          %377 = vst.msk [vmem:[%s147 + $0x18] sm:$0xff] %vm183, %v370
          %378 = vst.msk [vmem:[%s147 + $0x20] sm:$0xff] %vm183, %v371
          %379 = vst.msk [vmem:[%s147 + $0x28] sm:$0xff] %vm183, %v372
          %380 = vst.msk [vmem:[%s147 + $0x30] sm:$0xff] %vm183, %v373
        $region33: #{tpu_custom_call.1} parent=23 // loop_footer
          %s195 = sadd.s32 %s193, 1
        $region34: #{tpu_custom_call.1} parent=23 // loop_footer_branch
          %192 = sbr.rel target = $region30
        $region35: #{tpu_custom_call.1} parent=23 // loop_exit
          _
        %p381 = scmp.lt.s32.totalorder %s24, 1
        %s382 = scalar_select %p381, %s24, 1
        %s383 = smul.addr %s382, 7
        %s384 = smul.addr %s383, 8
        %s385 = scalar_lea.vmem %s2, %s384
        // Predicated region
        $region36: #{tpu_custom_call.1} parent=23 // pred_check
          %p386 = pneg %p68
        $region37: #{tpu_custom_call.1} parent=23 // pred_check_branch
          %388 = sbr.rel (%p386) target = $region39
        $region38: #{tpu_custom_call.1} parent=23 // pred_region
          _
        $region39: #{tpu_custom_call.1} parent=23 // pred_fallthru
          _
      $region24: #{tpu_custom_call.1} parent=5 // pred_fallthru
        _
      %p389 = scmp.le.s32.totalorder 2, %s19
      // Predicated region
      $region40: #{tpu_custom_call.1} parent=5 // pred_check
        %p390 = pneg %p389
      $region41: #{tpu_custom_call.1} parent=5 // pred_check_branch
        %392 = sbr.rel (%p390) target = $region43
      $region42: #{tpu_custom_call.1} parent=5 // pred_region
        %s393 = ssub.s32 %s19, 2
        // Predicated region
        $region44: #{tpu_custom_call.1} parent=42 // pred_check
          %p394 = pneg %p74
        $region45: #{tpu_custom_call.1} parent=42 // pred_check_branch
          %396 = sbr.rel (%p394) target = $region47
        $region46: #{tpu_custom_call.1} parent=42 // pred_region
          %p397 = scmp.lt.s32.totalorder %s25, 1
          %s398 = scalar_select %p397, %s25, 1
          %s399 = smul.addr %s398, 7
          %s400 = smul.addr %s399, 8
          %s401 = scalar_lea.vmem %s2, %s400
        $region47: #{tpu_custom_call.1} parent=42 // pred_fallthru
          _
      $region43: #{tpu_custom_call.1} parent=5 // pred_fallthru
        _
    $region6: #{tpu_custom_call.1} parent=1 // loop_footer
      %s23 = sadd.s32 1, %s19
    $region7: #{tpu_custom_call.1} parent=1 // loop_footer_branch
      %18 = sbr.rel target = $region3
    $region8: #{tpu_custom_call.1} parent=1 // loop_exit
      _
    %402 = vsyncpa [#allocation6], 1
    %s403 = scalar_lea.sflag [#allocation6], 1
    %404 = vsyncpa %s403, 1

</llo_original>
